<compile_context>
chip_gen: v5e
topology: v5e:2x2
jax: 0.10.0
libtpu: 0.0.40
codegen_flags: <defaults>
</compile_context>

<pallas_src>
import functools
from typing import NamedTuple

import jax
import jax.numpy as jnp
from jax.experimental import pallas as pl
from jax.experimental.pallas import tpu as pltpu

EPS = 0.003
LANE = 128      # TPU lane width
SUBLANE = 8     # f32 sublane width


class PreparedActorParams(NamedTuple):
    w1: jax.Array
    b1: jax.Array
    w2: jax.Array
    b2: jax.Array
    w3: jax.Array
    b3: jax.Array
    w4: jax.Array
    b4: jax.Array
    action_dim: int


def _round_up(x, m):
    return ((x + m - 1) // m) * m


def _is_v5e():
    try:
        kind = jax.devices()[0].device_kind.lower()
    except Exception:
        return False
    return ("v5 lite" in kind) or ("v5e" in kind) or ("v5lite" in kind)


def _num_tensorcores():
    # v7x exposes 2 TensorCores per chip; v5e/v6e have 1.  Fall back to 1 if
    # the device object does not advertise a core count.
    try:
        dev = jax.devices()[0]
        n = int(getattr(dev, "num_cores", 1))
        return max(1, min(n, 4))
    except Exception:
        return 1


# ----------------------------------------------------------------------------
# Kernel
# ----------------------------------------------------------------------------
def _actor_kernel(x_ref, w1_ref, b1_ref, w2_ref, b2_ref, w3_ref, b3_ref,
                  w4_ref, b4_ref, o_ref, *, action_lim):
    """relu(xW1+b1) -> relu(.W2+b2) -> relu(.W3+b3) -> tanh(.W4+b4)*action_lim."""
    mxu_dtype = w1_ref.dtype   # bf16 on the fast path, f32 otherwise
    ew_dtype = b1_ref.dtype    # bias/ReLU dtype: bf16 on v6e/v7x, f32 on v5e/f32

    # Layer 1: MXU matmul with f32 accumulation, elementwise in ew_dtype, then
    # hand the next MXU its operand dtype directly (no redundant casts when
    # ew_dtype == mxu_dtype).
    h = jnp.dot(x_ref[...].astype(mxu_dtype), w1_ref[...],
                preferred_element_type=jnp.float32)
    h = jnp.maximum(h.astype(ew_dtype) + b1_ref[...], 0).astype(mxu_dtype)
    # Layer 2
    h = jnp.dot(h, w2_ref[...], preferred_element_type=jnp.float32)
    h = jnp.maximum(h.astype(ew_dtype) + b2_ref[...], 0).astype(mxu_dtype)
    # Layer 3
    h = jnp.dot(h, w3_ref[...], preferred_element_type=jnp.float32)
    h = jnp.maximum(h.astype(ew_dtype) + b3_ref[...], 0).astype(mxu_dtype)
    # Layer 4: final bias + tanh stay f32 for output accuracy (tiny lane count
    # of real outputs; padded lanes ride along for free in the same vregs).
    a = jnp.dot(h, w4_ref[...], preferred_element_type=jnp.float32)
    a = jnp.tanh(a + b4_ref[...]) * action_lim
    o_ref[...] = a.astype(o_ref.dtype)


# ----------------------------------------------------------------------------
# One-time parameter preprocessing (hoisted out of the forward path)
# ----------------------------------------------------------------------------
def prepare_params(params, *, use_bf16=True, bf16_elementwise=None):
    """Pad narrow trailing layers to the 128-lane width and cast MXU (and
    optionally elementwise) operands.  Call once at init / after each optimizer
    update, NOT per forward call.

    Zero padding is exact: padded h3 lanes are relu(0)=0, padded w4 rows/cols
    are 0, padded output lanes (tanh(0+0)=0) are sliced off by the wrapper.
    """
    w1, b1, w2, b2, w3, b3, w4, b4 = params
    action_dim = w4.shape[1]
    if bf16_elementwise is None:
        # bf16 VALU/EUP are native on v6e/v7x; v5e keeps f32 elementwise.
        bf16_elementwise = bool(use_bf16) and not _is_v5e()

    pad_h3 = (-w3.shape[1]) % LANE
    pad_out = (-action_dim) % LANE
    if pad_h3:
        w3 = jnp.pad(w3, ((0, 0), (0, pad_h3)))
        b3 = jnp.pad(b3, ((0, 0), (0, pad_h3)))
        w4 = jnp.pad(w4, ((0, pad_h3), (0, 0)))
    if pad_out:
        w4 = jnp.pad(w4, ((0, 0), (0, pad_out)))
        b4 = jnp.pad(b4, ((0, 0), (0, pad_out)))

    if use_bf16:
        w1, w2, w3, w4 = (w.astype(jnp.bfloat16) for w in (w1, w2, w3, w4))
    else:
        w1, w2, w3, w4 = (w.astype(jnp.float32) for w in (w1, w2, w3, w4))
    ew = jnp.bfloat16 if bf16_elementwise else jnp.float32
    b1, b2, b3 = (b.astype(ew) for b in (b1, b2, b3))
    b4 = b4.astype(jnp.float32)   # final bias + tanh stay f32

    return PreparedActorParams(w1, b1, w2, b2, w3, b3, w4, b4, action_dim)


# ----------------------------------------------------------------------------
# Forward pass
# ----------------------------------------------------------------------------
def actor_forward(state, prepared, action_lim, *, batch_tile=1024,
                  out_dtype=None, num_tensorcores=None, return_padded=False):
    """Runs the Actor MLP forward pass as a single fused Pallas kernel.

    `prepared` must come from prepare_params().  Set out_dtype=jnp.bfloat16 to
    halve output writeback bytes; set return_padded=True to skip the final
    slice when downstream consumers can read the padded (n_pad, 128) output.
    """
    n, state_dim = state.shape
    p = prepared
    out_dim = p.w4.shape[1]
    action_dim = p.action_dim
    out_dtype = jnp.dtype(state.dtype if out_dtype is None else out_dtype)

    if num_tensorcores is None:
        num_tensorcores = _num_tensorcores()

    # --- Batch tiling ---------------------------------------------------------
    # Big tiles amortize the ~0.35us per-grid-step pipeline overhead; the tile
    # shrinks for small batches so we never pad more than one tile.
    batch_tile = max(SUBLANE, _round_up(batch_tile, SUBLANE))
    tile = min(batch_tile, _round_up(max(n, 1), SUBLANE))
    # Megacore: guarantee grid >= num_tensorcores so ("parallel",) shards the
    # batch across both TCs on v7x.  On 1-TC chips this is a no-op.
    if num_tensorcores > 1 and n >= num_tensorcores * SUBLANE:
        split_tile = _round_up(pl.cdiv(n, num_tensorcores), SUBLANE)
        tile = min(tile, split_tile)
    n_pad = _round_up(n, tile)
    if n_pad != n:
        # TODO(synk): a masked-store ragged last tile would avoid this wrapper
        # pad copy for very large n; at most one tile of pad is accepted here.
        state = jnp.pad(state, ((0, n_pad - n), (0, 0)))
    grid = (n_pad // tile,)

    # --- VMEM budget: only override the default scoped limit if a huge tile
    # actually needs it (v5e default is 16 MiB).
    h1, h2, h3 = p.w1.shape[1], p.w2.shape[1], p.w3.shape[1]
    weight_bytes = sum(a.size * a.dtype.itemsize for a in
                       (p.w1, p.b1, p.w2, p.b2, p.w3, p.b3, p.w4, p.b4))
    block_bytes = 2 * tile * (state_dim * state.dtype.itemsize
                              + out_dim * out_dtype.itemsize)
    interm_bytes = 2 * tile * (h1 + h2 + h3 + out_dim) * 4
    vmem_est = weight_bytes + block_bytes + interm_bytes
    vmem_limit = None
    if vmem_est > 12 * 1024 * 1024:
        vmem_limit = min(_round_up(vmem_est + (4 << 20), 1 << 20), 48 << 20)

    # --- Cost estimate so XLA schedules surrounding ops around the call. ------
    cost = pl.CostEstimate(
        flops=2 * n_pad * (state_dim * h1 + h1 * h2 + h2 * h3 + h3 * out_dim),
        transcendentals=n_pad * out_dim,
        bytes_accessed=(n_pad * state_dim * state.dtype.itemsize
                        + n_pad * out_dim * out_dtype.itemsize
                        + weight_bytes))

    # Constant (0, 0) index maps: weights/biases are DMA'd once and stay
    # resident in VMEM across all grid steps (whole model < 200 KB).
    def weight_spec(arr):
        return pl.BlockSpec(arr.shape, lambda i: (0, 0))

    kernel = functools.partial(_actor_kernel, action_lim=float(action_lim))

    out = pl.pallas_call(
        kernel,
        out_shape=jax.ShapeDtypeStruct((n_pad, out_dim), out_dtype),
        grid_spec=pltpu.PrefetchScalarGridSpec(
            num_scalar_prefetch=0,
            grid=grid,
            in_specs=[
                pl.BlockSpec((tile, state_dim), lambda i: (i, 0)),
                weight_spec(p.w1), weight_spec(p.b1),
                weight_spec(p.w2), weight_spec(p.b2),
                weight_spec(p.w3), weight_spec(p.b3),
                weight_spec(p.w4), weight_spec(p.b4),
            ],
            out_specs=pl.BlockSpec((tile, out_dim), lambda i: (i, 0)),
        ),
        compiler_params=pltpu.CompilerParams(
            dimension_semantics=("parallel",),
            vmem_limit_bytes=vmem_limit),
        cost_estimate=cost,
    )(state, p.w1, p.b1, p.w2, p.b2, p.w3, p.b3, p.w4, p.b4)

    if return_padded:
        return out
    return out[:n, :action_dim]


# ----------------------------------------------------------------------------
# Init + pure-JAX reference
# ----------------------------------------------------------------------------
def init_actor_params(key, state_dim, action_dim):
    """Deterministic init mirroring the PyTorch Actor.__init__ scheme."""
    ks = jax.random.split(key, 8)

    def uniform(k, shape, bound):
        return jax.random.uniform(k, shape, jnp.float32, -bound, bound)

    # torch fanin_init(weight.size()) uses size[0] == out_features as the fanin;
    # torch nn.Linear's default bias init uses 1/sqrt(in_features).
    w1 = uniform(ks[0], (state_dim, 256), 1.0 / jnp.sqrt(256.0))
    b1 = uniform(ks[1], (1, 256), 1.0 / jnp.sqrt(float(state_dim)))
    w2 = uniform(ks[2], (256, 128), 1.0 / jnp.sqrt(128.0))
    b2 = uniform(ks[3], (1, 128), 1.0 / jnp.sqrt(256.0))
    w3 = uniform(ks[4], (128, 64), 1.0 / jnp.sqrt(64.0))
    b3 = uniform(ks[5], (1, 64), 1.0 / jnp.sqrt(128.0))
    w4 = uniform(ks[6], (64, action_dim), EPS)
    b4 = uniform(ks[7], (1, action_dim), 1.0 / jnp.sqrt(64.0))  # torch default bias
    return (w1, b1, w2, b2, w3, b3, w4, b4)


def actor_reference(state, params, action_lim):
    w1, b1, w2, b2, w3, b3, w4, b4 = params
    h = jnp.maximum(state @ w1 + b1, 0.0)
    h = jnp.maximum(h @ w2 + b2, 0.0)
    h = jnp.maximum(h @ w3 + b3, 0.0)
    return jnp.tanh(h @ w4 + b4) * action_lim


if __name__ == "__main__":
    state_dim, action_dim, action_lim = 16, 4, 2.0
    key = jax.random.PRNGKey(0)
    k_param, k_state = jax.random.split(key)
    params = init_actor_params(k_param, state_dim, action_dim)

    # --- small batch, remainder path (37 is not a multiple of the tile) -------
    batch = 37
    state = jax.random.normal(k_state, (batch, state_dim), jnp.float32)
    ref = actor_reference(state, params, action_lim)

    # f32 MXU + f32 elementwise: tight check against the pure-JAX reference.
    prep_f32 = prepare_params(params, use_bf16=False, bf16_elementwise=False)
    out_f32 = jax.block_until_ready(actor_forward(state, prep_f32, action_lim))
    assert out_f32.shape == (batch, action_dim)
    assert jnp.allclose(out_f32, ref, atol=1e-5, rtol=1e-5)

    # bf16 MXU + bf16 elementwise fast path (v6e/v7x production config).
    prep_bf16 = prepare_params(params, use_bf16=True, bf16_elementwise=True)
    out_bf16 = jax.block_until_ready(actor_forward(state, prep_bf16, action_lim))
    assert out_bf16.shape == (batch, action_dim)
    assert jnp.allclose(out_bf16, ref, atol=3e-2, rtol=0)

    # bf16 output writeback (halves padded-output HBM bytes).
    out_bf16o = jax.block_until_ready(
        actor_forward(state, prep_bf16, action_lim, out_dtype=jnp.bfloat16))
    assert out_bf16o.dtype == jnp.bfloat16
    assert jnp.allclose(out_bf16o.astype(jnp.float32), ref, atol=3e-2, rtol=0)

    # mid-size batch with a forced 2-TensorCore split: exercises the megacore
    # tile-capping path (grid=2) and multi-step pipelining on any chip.
    batch2 = 300
    state2 = jax.random.normal(jax.random.PRNGKey(1), (batch2, state_dim),
                               jnp.float32)
    ref2 = actor_reference(state2, params, action_lim)
    out2 = jax.block_until_ready(
        actor_forward(state2, prep_bf16, action_lim, num_tensorcores=2))
    assert out2.shape == (batch2, action_dim)
    assert jnp.allclose(out2, ref2, atol=3e-2, rtol=0)

    print("KERNEL_OK")
</pallas_src>

<mosaic_0001>
module attributes {stable_mosaic.version = 11 : i64} {
  func.func @_actor_kernel(%arg0: i32, %arg1: memref<40x16xf32, #tpu.memory_space<vmem>>, %arg2: memref<16x256xf32, #tpu.memory_space<vmem>>, %arg3: memref<1x256xf32, #tpu.memory_space<vmem>>, %arg4: memref<256x128xf32, #tpu.memory_space<vmem>>, %arg5: memref<1x128xf32, #tpu.memory_space<vmem>>, %arg6: memref<128x128xf32, #tpu.memory_space<vmem>>, %arg7: memref<1x128xf32, #tpu.memory_space<vmem>>, %arg8: memref<128x128xf32, #tpu.memory_space<vmem>>, %arg9: memref<1x128xf32, #tpu.memory_space<vmem>>, %arg10: memref<40x128xf32, #tpu.memory_space<vmem>>) attributes {dimension_semantics = [#tpu.dimension_semantics<parallel>], iteration_bounds = array<i64: 1>, scalar_prefetch = 0 : i64, scratch_operands = 0 : i64, tpu.core_type = #tpu.core_type<tc>, window_params = [{transform_indices = @transform_0, window_bounds = array<i64: 40, 16>}, {pipeline_mode = #tpu.pipeline_mode<synchronous>, transform_indices = @transform_1, window_bounds = array<i64: 16, 256>}, {pipeline_mode = #tpu.pipeline_mode<synchronous>, transform_indices = @transform_2, window_bounds = array<i64: 1, 256>}, {pipeline_mode = #tpu.pipeline_mode<synchronous>, transform_indices = @transform_3, window_bounds = array<i64: 256, 128>}, {pipeline_mode = #tpu.pipeline_mode<synchronous>, transform_indices = @transform_4, window_bounds = array<i64: 1, 128>}, {pipeline_mode = #tpu.pipeline_mode<synchronous>, transform_indices = @transform_5, window_bounds = array<i64: 128, 128>}, {pipeline_mode = #tpu.pipeline_mode<synchronous>, transform_indices = @transform_6, window_bounds = array<i64: 1, 128>}, {pipeline_mode = #tpu.pipeline_mode<synchronous>, transform_indices = @transform_7, window_bounds = array<i64: 128, 128>}, {pipeline_mode = #tpu.pipeline_mode<synchronous>, transform_indices = @transform_8, window_bounds = array<i64: 1, 128>}, {transform_indices = @transform_9, window_bounds = array<i64: 40, 128>}]} {
    %c0 = arith.constant 0 : index
    %c0_0 = arith.constant 0 : index
    %0 = vector.load %arg1[%c0, %c0_0] : memref<40x16xf32, #tpu.memory_space<vmem>>, vector<40x16xf32>
    %c0_1 = arith.constant 0 : index
    %c0_2 = arith.constant 0 : index
    %1 = vector.load %arg2[%c0_1, %c0_2] : memref<16x256xf32, #tpu.memory_space<vmem>>, vector<16x256xf32>
    %cst = arith.constant dense<0.000000e+00> : vector<40x256xf32>
    %2 = tpu.matmul %0, %1, %cst {dimension_numbers = #tpu.dot_dimension_numbers<[1], [0], [0], [1], [0, 0, 1, 1], [], []>} : vector<40x16xf32>, vector<16x256xf32>, vector<40x256xf32> -> vector<40x256xf32>
    %c0_3 = arith.constant 0 : index
    %c0_4 = arith.constant 0 : index
    %3 = vector.load %arg3[%c0_3, %c0_4] : memref<1x256xf32, #tpu.memory_space<vmem>>, vector<1x256xf32>
    %4 = vector.broadcast %3 : vector<1x256xf32> to vector<40x256xf32>
    %5 = arith.addf %2, %4 : vector<40x256xf32>
    %cst_5 = arith.constant 0.000000e+00 : f32
    %6 = vector.broadcast %cst_5 : f32 to vector<40x256xf32>
    %7 = arith.maximumf %5, %6 : vector<40x256xf32>
    %c0_6 = arith.constant 0 : index
    %c0_7 = arith.constant 0 : index
    %8 = vector.load %arg4[%c0_6, %c0_7] : memref<256x128xf32, #tpu.memory_space<vmem>>, vector<256x128xf32>
    %cst_8 = arith.constant dense<0.000000e+00> : vector<40x128xf32>
    %9 = tpu.matmul %7, %8, %cst_8 {dimension_numbers = #tpu.dot_dimension_numbers<[1], [0], [0], [1], [0, 0, 1, 1], [], []>} : vector<40x256xf32>, vector<256x128xf32>, vector<40x128xf32> -> vector<40x128xf32>
    %c0_9 = arith.constant 0 : index
    %c0_10 = arith.constant 0 : index
    %10 = vector.load %arg5[%c0_9, %c0_10] : memref<1x128xf32, #tpu.memory_space<vmem>>, vector<1x128xf32>
    %11 = vector.broadcast %10 : vector<1x128xf32> to vector<40x128xf32>
    %12 = arith.addf %9, %11 : vector<40x128xf32>
    %cst_11 = arith.constant 0.000000e+00 : f32
    %13 = vector.broadcast %cst_11 : f32 to vector<40x128xf32>
    %14 = arith.maximumf %12, %13 : vector<40x128xf32>
    %c0_12 = arith.constant 0 : index
    %c0_13 = arith.constant 0 : index
    %15 = vector.load %arg6[%c0_12, %c0_13] : memref<128x128xf32, #tpu.memory_space<vmem>>, vector<128x128xf32>
    %cst_14 = arith.constant dense<0.000000e+00> : vector<40x128xf32>
    %16 = tpu.matmul %14, %15, %cst_14 {dimension_numbers = #tpu.dot_dimension_numbers<[1], [0], [0], [1], [0, 0, 1, 1], [], []>} : vector<40x128xf32>, vector<128x128xf32>, vector<40x128xf32> -> vector<40x128xf32>
    %c0_15 = arith.constant 0 : index
    %c0_16 = arith.constant 0 : index
    %17 = vector.load %arg7[%c0_15, %c0_16] : memref<1x128xf32, #tpu.memory_space<vmem>>, vector<1x128xf32>
    %18 = vector.broadcast %17 : vector<1x128xf32> to vector<40x128xf32>
    %19 = arith.addf %16, %18 : vector<40x128xf32>
    %cst_17 = arith.constant 0.000000e+00 : f32
    %20 = vector.broadcast %cst_17 : f32 to vector<40x128xf32>
    %21 = arith.maximumf %19, %20 : vector<40x128xf32>
    %c0_18 = arith.constant 0 : index
    %c0_19 = arith.constant 0 : index
    %22 = vector.load %arg8[%c0_18, %c0_19] : memref<128x128xf32, #tpu.memory_space<vmem>>, vector<128x128xf32>
    %cst_20 = arith.constant dense<0.000000e+00> : vector<40x128xf32>
    %23 = tpu.matmul %21, %22, %cst_20 {dimension_numbers = #tpu.dot_dimension_numbers<[1], [0], [0], [1], [0, 0, 1, 1], [], []>} : vector<40x128xf32>, vector<128x128xf32>, vector<40x128xf32> -> vector<40x128xf32>
    %c0_21 = arith.constant 0 : index
    %c0_22 = arith.constant 0 : index
    %24 = vector.load %arg9[%c0_21, %c0_22] : memref<1x128xf32, #tpu.memory_space<vmem>>, vector<1x128xf32>
    %25 = vector.broadcast %24 : vector<1x128xf32> to vector<40x128xf32>
    %26 = arith.addf %23, %25 : vector<40x128xf32>
    %27 = math.tanh %26 : vector<40x128xf32>
    %cst_23 = arith.constant 2.000000e+00 : f32
    %28 = vector.broadcast %cst_23 : f32 to vector<40x128xf32>
    %29 = arith.mulf %27, %28 : vector<40x128xf32>
    %c0_24 = arith.constant 0 : index
    %c0_25 = arith.constant 0 : index
    %30 = vector.load %arg10[%c0_24, %c0_25] : memref<40x128xf32, #tpu.memory_space<vmem>>, vector<40x128xf32>
    tpu.vector_store %arg10[%c0_24, %c0_25], %29 {strides = array<i32>} : memref<40x128xf32, #tpu.memory_space<vmem>>, vector<40x128xf32>,
    return
  }
  func.func @transform_0(%arg0: i32) -> (i32, i32) {
    %c0_i32 = arith.constant 0 : i32
    %c0_i32_0 = arith.constant 0 : i32
    return %arg0, %c0_i32 : i32, i32
  }
  func.func @transform_1(%arg0: i32) -> (i32, i32) {
    %c0_i32 = arith.constant 0 : i32
    %c0_i32_0 = arith.constant 0 : i32
    %c0_i32_1 = arith.constant 0 : i32
    return %c0_i32, %c0_i32_0 : i32, i32
  }
  func.func @transform_2(%arg0: i32) -> (i32, i32) {
    %c0_i32 = arith.constant 0 : i32
    %c0_i32_0 = arith.constant 0 : i32
    %c0_i32_1 = arith.constant 0 : i32
    return %c0_i32, %c0_i32_0 : i32, i32
  }
  func.func @transform_3(%arg0: i32) -> (i32, i32) {
    %c0_i32 = arith.constant 0 : i32
    %c0_i32_0 = arith.constant 0 : i32
    %c0_i32_1 = arith.constant 0 : i32
    return %c0_i32, %c0_i32_0 : i32, i32
  }
  func.func @transform_4(%arg0: i32) -> (i32, i32) {
    %c0_i32 = arith.constant 0 : i32
    %c0_i32_0 = arith.constant 0 : i32
    %c0_i32_1 = arith.constant 0 : i32
    return %c0_i32, %c0_i32_0 : i32, i32
  }
  func.func @transform_5(%arg0: i32) -> (i32, i32) {
    %c0_i32 = arith.constant 0 : i32
    %c0_i32_0 = arith.constant 0 : i32
    %c0_i32_1 = arith.constant 0 : i32
    return %c0_i32, %c0_i32_0 : i32, i32
  }
  func.func @transform_6(%arg0: i32) -> (i32, i32) {
    %c0_i32 = arith.constant 0 : i32
    %c0_i32_0 = arith.constant 0 : i32
    %c0_i32_1 = arith.constant 0 : i32
    return %c0_i32, %c0_i32_0 : i32, i32
  }
  func.func @transform_7(%arg0: i32) -> (i32, i32) {
    %c0_i32 = arith.constant 0 : i32
    %c0_i32_0 = arith.constant 0 : i32
    %c0_i32_1 = arith.constant 0 : i32
    return %c0_i32, %c0_i32_0 : i32, i32
  }
  func.func @transform_8(%arg0: i32) -> (i32, i32) {
    %c0_i32 = arith.constant 0 : i32
    %c0_i32_0 = arith.constant 0 : i32
    %c0_i32_1 = arith.constant 0 : i32
    return %c0_i32, %c0_i32_0 : i32, i32
  }
  func.func @transform_9(%arg0: i32) -> (i32, i32) {
    %c0_i32 = arith.constant 0 : i32
    %c0_i32_0 = arith.constant 0 : i32
    return %arg0, %c0_i32 : i32, i32
  }
}

</mosaic_0001>

<llo_original>
// kernel: tpu_custom_call.1
$region0: #{tpu_custom_call.1}
  #allocation0 [shape = 'u32[]', space=smem, size = 0x4, offset = 0x4, fixed_abs, tag = 'smem constant byte address 0x4 - core index']
  #allocation1 [shape = 'u32[72,128]{1,0:T(1,128)}', space=vmem, size = 0x9000, scoped, tag = 'internal scratch']
  %s0 = inlined_call_operand.vmem [shape: f32[40,16], index: 0, kind: input, shape index: {}]
  %s1 = inlined_call_operand.vmem [shape: f32[16,256], index: 1, kind: input, shape index: {}]
  %s2 = inlined_call_operand.vmem [shape: f32[1,256], index: 2, kind: input, shape index: {}]
  %s3 = inlined_call_operand.hbm [shape: f32[256,128], index: 3, kind: input, shape index: {}]
  %s4 = inlined_call_operand.vmem [shape: f32[1,128], index: 4, kind: input, shape index: {}]
  %s5 = inlined_call_operand.hbm [shape: f32[128,128], index: 5, kind: input, shape index: {}]
  %s6 = inlined_call_operand.vmem [shape: f32[1,128], index: 6, kind: input, shape index: {}]
  %s7 = inlined_call_operand.hbm [shape: f32[128,128], index: 7, kind: input, shape index: {}]
  %s8 = inlined_call_operand.vmem [shape: f32[1,128], index: 8, kind: input, shape index: {}]
  %s9 = inlined_call_operand.hbm [shape: f32[40,128], index: 9, kind: output, shape index: {}]
  %s10 = sld [smem:[#allocation0]]
  $region58: #{tpu_custom_call.1} parent=0
    _
  %s12 = ssub.s32 1, %s10
  %s13 = scalar_select 0, %s12, %s10
  $region1: #{tpu_custom_call.1} parent=0
    #allocation2 [shape = 'u8[131072]{0}', space=vmem, size = 0x20000, scoped, tag = 'input window, operand 3, single buffered']
    #allocation3 [shape = 's32[1]{0}', space=sflag, size = 0x4, scoped, tag = 'scoped memory for tpu_custom_call.1']
    #allocation4 [shape = 's32[1]{0}', space=sflag, size = 0x4, scoped, tag = 'scoped memory for tpu_custom_call.1']
    #allocation5 [shape = 'u8[65536]{0}', space=vmem, size = 0x10000, scoped, tag = 'input window, operand 5, single buffered']
    #allocation6 [shape = 's32[1]{0}', space=sflag, size = 0x4, scoped, tag = 'scoped memory for tpu_custom_call.1']
    #allocation7 [shape = 'u8[65536]{0}', space=vmem, size = 0x10000, scoped, tag = 'input window, operand 7, single buffered']
    #allocation8 [shape = 'u8[20480]{0}', space=vmem, size = 0x5000, scoped, tag = 'output window, operand 0, single buffered']
    %14 = vsyncpa [#allocation3], 0
    %15 = vsyncpa [#allocation6], 0
    %16 = vsyncpa [#allocation4], 0
    // Predicated region
    $region2: #{tpu_custom_call.1} parent=1 // pred_check
      _
    $region3: #{tpu_custom_call.1} parent=1 // pred_check_branch
      %18 = sbr.rel (0) target = $region5
    $region4: #{tpu_custom_call.1} parent=1 // pred_region
      _
    $region5: #{tpu_custom_call.1} parent=1 // pred_fallthru
      _
    // Predicated region
    $region6: #{tpu_custom_call.1} parent=1 // pred_check
      _
    $region7: #{tpu_custom_call.1} parent=1 // pred_check_branch
      %20 = sbr.rel (0) target = $region9
    $region8: #{tpu_custom_call.1} parent=1 // pred_region
      _
    $region9: #{tpu_custom_call.1} parent=1 // pred_fallthru
      _
    // Predicated region
    $region10: #{tpu_custom_call.1} parent=1 // pred_check
      _
    $region11: #{tpu_custom_call.1} parent=1 // pred_check_branch
      %22 = sbr.rel (0) target = $region13
    $region12: #{tpu_custom_call.1} parent=1 // pred_region
      _
    $region13: #{tpu_custom_call.1} parent=1 // pred_fallthru
      _
    // Predicated region
    $region14: #{tpu_custom_call.1} parent=1 // pred_check
      _
    $region15: #{tpu_custom_call.1} parent=1 // pred_check_branch
      %24 = sbr.rel (0) target = $region17
    $region16: #{tpu_custom_call.1} parent=1 // pred_region
      %26 = vsyncadd [#allocation3], 0
      %s27 = sshll.u32 %s3, 4
      %s28 = int_to_ptr.hbm [resolvable:$true] %s27
      %s29 = sshll.u32 [#allocation2], 4
      %s30 = int_to_ptr.vmem [resolvable:$true] %s29
      %35 = dma.hbm_to_vmem [thread:$0]  %s28, 4096, %s30, [#allocation3], 128, 128, 8
    $region17: #{tpu_custom_call.1} parent=1 // pred_fallthru
      _
    // Predicated region
    $region18: #{tpu_custom_call.1} parent=1 // pred_check
      _
    $region19: #{tpu_custom_call.1} parent=1 // pred_check_branch
      %37 = sbr.rel (0) target = $region21
    $region20: #{tpu_custom_call.1} parent=1 // pred_region
      _
    $region21: #{tpu_custom_call.1} parent=1 // pred_fallthru
      _
    // Predicated region
    $region22: #{tpu_custom_call.1} parent=1 // pred_check
      _
    $region23: #{tpu_custom_call.1} parent=1 // pred_check_branch
      %39 = sbr.rel (0) target = $region25
    $region24: #{tpu_custom_call.1} parent=1 // pred_region
      %41 = vsyncadd [#allocation6], 0
      %s42 = sshll.u32 %s5, 4
      %s43 = int_to_ptr.hbm [resolvable:$true] %s42
      %s44 = sshll.u32 [#allocation5], 4
      %s45 = int_to_ptr.vmem [resolvable:$true] %s44
      %50 = dma.hbm_to_vmem [thread:$0]  %s43, 2048, %s45, [#allocation6], 128, 128, 8
    $region25: #{tpu_custom_call.1} parent=1 // pred_fallthru
      _
    // Predicated region
    $region26: #{tpu_custom_call.1} parent=1 // pred_check
      _
    $region27: #{tpu_custom_call.1} parent=1 // pred_check_branch
      %52 = sbr.rel (0) target = $region29
    $region28: #{tpu_custom_call.1} parent=1 // pred_region
      _
    $region29: #{tpu_custom_call.1} parent=1 // pred_fallthru
      _
    // Predicated region
    $region30: #{tpu_custom_call.1} parent=1 // pred_check
      _
    $region31: #{tpu_custom_call.1} parent=1 // pred_check_branch
      %54 = sbr.rel (0) target = $region33
    $region32: #{tpu_custom_call.1} parent=1 // pred_region
      %56 = vsyncadd [#allocation6], 0
      %s57 = sshll.u32 %s7, 4
      %s58 = int_to_ptr.hbm [resolvable:$true] %s57
      %s59 = sshll.u32 [#allocation7], 4
      %s60 = int_to_ptr.vmem [resolvable:$true] %s59
      %65 = dma.hbm_to_vmem [thread:$0]  %s58, 2048, %s60, [#allocation6], 128, 128, 8
    $region33: #{tpu_custom_call.1} parent=1 // pred_fallthru
      _
    // Predicated region
    $region34: #{tpu_custom_call.1} parent=1 // pred_check
      _
    $region35: #{tpu_custom_call.1} parent=1 // pred_check_branch
      %67 = sbr.rel (0) target = $region37
    $region36: #{tpu_custom_call.1} parent=1 // pred_region
      _
    $region37: #{tpu_custom_call.1} parent=1 // pred_fallthru
      _
    // Predicated region
    $region38: #{tpu_custom_call.1} parent=1 // pred_check
      _
    $region39: #{tpu_custom_call.1} parent=1 // pred_check_branch
      %69 = sbr.rel (0) target = $region41
    $region40: #{tpu_custom_call.1} parent=1 // pred_region
      %71 = dma.done [#allocation3], 4096
    $region41: #{tpu_custom_call.1} parent=1 // pred_fallthru
      _
    // Predicated region
    $region42: #{tpu_custom_call.1} parent=1 // pred_check
      _
    $region43: #{tpu_custom_call.1} parent=1 // pred_check_branch
      %73 = sbr.rel (0) target = $region45
    $region44: #{tpu_custom_call.1} parent=1 // pred_region
      %75 = dma.done [#allocation6], 2048
    $region45: #{tpu_custom_call.1} parent=1 // pred_fallthru
      _
    // Predicated region
    $region46: #{tpu_custom_call.1} parent=1 // pred_check
      _
    $region47: #{tpu_custom_call.1} parent=1 // pred_check_branch
      %77 = sbr.rel (0) target = $region49
    $region48: #{tpu_custom_call.1} parent=1 // pred_region
      %79 = dma.done [#allocation6], 2048
    $region49: #{tpu_custom_call.1} parent=1 // pred_fallthru
      _
    %v80 = vld [vmem:[%s0] sm:$0xff]
    %v81 = vld [vmem:[%s0 + $0x8] sm:$0xff]
    %v82 = vld [vmem:[%s0 + $0x10] sm:$0xff]
    %v83 = vld [vmem:[%s0 + $0x18] sm:$0xff]
    %v84 = vld [vmem:[%s0 + $0x20] sm:$0xff]
    %v85 = vld [vmem:[%s1] sm:$0xff]
    %v86 = vld [vmem:[%s1 + $0x8] sm:$0xff]
    %v87 = vld [vmem:[%s1 + $0x10] sm:$0xff]
    %v88 = vld [vmem:[%s1 + $0x18] sm:$0xff]
    %v89 = vld [vmem:[%s2] sm:$0x3]
    %v91 = vperm.slane %v89, 0
    %v92 = vperm.slane %v89, 1
    %vm95 = vcmask 130048
    %v97 = vsel %vm95, %v80, 0
    %v100 = vsel %vm95, %v81, 0
    %v103 = vsel %vm95, %v82, 0
    %v106 = vsel %vm95, %v83, 0
    %v109 = vsel %vm95, %v84, 0
    %111 = vmatpush.msra.mxu0 0.0
    %112 = vmatpush.msra.mxu0 0.0
    %113 = vmatpush.msra.mxu0 0.0
    %114 = vmatpush.msra.mxu0 0.0
    %115 = vmatpush.msra.mxu0 0.0
    %116 = vmatpush.msra.mxu0 0.0
    %117 = vmatpush.msra.mxu0 0.0
    %118 = vmatpush.msra.mxu0 0.0
    %119 = vmatpush.msra.mxu0 0.0
    %120 = vmatpush.msra.mxu0 0.0
    %121 = vmatpush.msra.mxu0 0.0
    %122 = vmatpush.msra.mxu0 0.0
    %123 = vmatpush.msra.mxu0 0.0
    %124 = vmatpush.msra.mxu0 0.0
    %125 = vmatpush.msra.mxu0 %v87
    %126 = vmatpush.msra.mxu0 %v85
    %127 = vmatmul.f32.gmra.mxu0 %v97
    %v128 = vpop.f32.mrf.mxu0
    %v129 = vadd.f32 %v91, %v128
    %130 = vmatmul.f32.gmra.mxu0 %v100
    %v131 = vpop.f32.mrf.mxu0
    %v132 = vadd.f32 %v91, %v131
    %133 = vmatmul.f32.gmra.mxu0 %v103
    %v134 = vpop.f32.mrf.mxu0
    %v135 = vadd.f32 %v91, %v134
    %136 = vmatmul.f32.gmra.mxu0 %v106
    %v137 = vpop.f32.mrf.mxu0
    %v138 = vadd.f32 %v91, %v137
    %139 = vmatmul.f32.gmra.mxu0 %v109
    %v140 = vpop.f32.mrf.mxu0
    %v141 = vadd.f32 %v91, %v140
    %142 = vdwg.mxu0
    %143 = vmatpush.msra.mxu0 0.0
    %144 = vmatpush.msra.mxu0 0.0
    %145 = vmatpush.msra.mxu0 0.0
    %146 = vmatpush.msra.mxu0 0.0
    %147 = vmatpush.msra.mxu0 0.0
    %148 = vmatpush.msra.mxu0 0.0
    %149 = vmatpush.msra.mxu0 0.0
    %150 = vmatpush.msra.mxu0 0.0
    %151 = vmatpush.msra.mxu0 0.0
    %152 = vmatpush.msra.mxu0 0.0
    %153 = vmatpush.msra.mxu0 0.0
    %154 = vmatpush.msra.mxu0 0.0
    %155 = vmatpush.msra.mxu0 0.0
    %156 = vmatpush.msra.mxu0 0.0
    %157 = vmatpush.msra.mxu0 %v88
    %158 = vmatpush.msra.mxu0 %v86
    %159 = vmatmul.f32.gmra.mxu0 %v97
    %v160 = vpop.f32.mrf.mxu0
    %v161 = vadd.f32 %v92, %v160
    %162 = vmatmul.f32.gmra.mxu0 %v100
    %v163 = vpop.f32.mrf.mxu0
    %v164 = vadd.f32 %v92, %v163
    %165 = vmatmul.f32.gmra.mxu0 %v103
    %v166 = vpop.f32.mrf.mxu0
    %v167 = vadd.f32 %v92, %v166
    %168 = vmatmul.f32.gmra.mxu0 %v106
    %v169 = vpop.f32.mrf.mxu0
    %v170 = vadd.f32 %v92, %v169
    %171 = vmatmul.f32.gmra.mxu0 %v109
    %v172 = vpop.f32.mrf.mxu0
    %v173 = vadd.f32 %v92, %v172
    %174 = vdwg.mxu0
    %v175 = vmax.f32 %v129, 0.0
    %v176 = vmax.f32 %v161, 0.0
    %v177 = vmax.f32 %v132, 0.0
    %v178 = vmax.f32 %v164, 0.0
    %v179 = vmax.f32 %v135, 0.0
    %v180 = vmax.f32 %v167, 0.0
    %v181 = vmax.f32 %v138, 0.0
    %v182 = vmax.f32 %v170, 0.0
    %v183 = vmax.f32 %v141, 0.0
    %v184 = vmax.f32 %v173, 0.0
    %v185 = vld [vmem:[#allocation2] sm:$0xff]
    %v186 = vld [vmem:[#allocation2 + $0x8] sm:$0xff]
    %v187 = vld [vmem:[#allocation2 + $0x10] sm:$0xff]
    %v188 = vld [vmem:[#allocation2 + $0x18] sm:$0xff]
    %v189 = vld [vmem:[#allocation2 + $0x20] sm:$0xff]
    %v190 = vld [vmem:[#allocation2 + $0x28] sm:$0xff]
    %v191 = vld [vmem:[#allocation2 + $0x30] sm:$0xff]
    %v192 = vld [vmem:[#allocation2 + $0x38] sm:$0xff]
    %v193 = vld [vmem:[#allocation2 + $0x40] sm:$0xff]
    %v194 = vld [vmem:[#allocation2 + $0x48] sm:$0xff]
    %v195 = vld [vmem:[#allocation2 + $0x50] sm:$0xff]
    %v196 = vld [vmem:[#allocation2 + $0x58] sm:$0xff]
    %v197 = vld [vmem:[#allocation2 + $0x60] sm:$0xff]
    %v198 = vld [vmem:[#allocation2 + $0x68] sm:$0xff]
    %v199 = vld [vmem:[#allocation2 + $0x70] sm:$0xff]
    %v200 = vld [vmem:[#allocation2 + $0x78] sm:$0xff]
    %v201 = vld [vmem:[#allocation2 + $0x80] sm:$0xff]
    %v202 = vld [vmem:[#allocation2 + $0x88] sm:$0xff]
    %v203 = vld [vmem:[#allocation2 + $0x90] sm:$0xff]
    %v204 = vld [vmem:[#allocation2 + $0x98] sm:$0xff]
    %v205 = vld [vmem:[#allocation2 + $0xa0] sm:$0xff]
    %v206 = vld [vmem:[#allocation2 + $0xa8] sm:$0xff]
    %v207 = vld [vmem:[#allocation2 + $0xb0] sm:$0xff]
    %v208 = vld [vmem:[#allocation2 + $0xb8] sm:$0xff]
    %v209 = vld [vmem:[#allocation2 + $0xc0] sm:$0xff]
    %v210 = vld [vmem:[#allocation2 + $0xc8] sm:$0xff]
    %v211 = vld [vmem:[#allocation2 + $0xd0] sm:$0xff]
    %v212 = vld [vmem:[#allocation2 + $0xd8] sm:$0xff]
    %v213 = vld [vmem:[#allocation2 + $0xe0] sm:$0xff]
    %v214 = vld [vmem:[#allocation2 + $0xe8] sm:$0xff]
    %v215 = vld [vmem:[#allocation2 + $0xf0] sm:$0xff]
    %v216 = vld [vmem:[#allocation2 + $0xf8] sm:$0xff]
    %v217 = vld [vmem:[%s4] sm:$0x1]
    %v219 = vperm.slane %v217, 0
    %221 = vmatpush.msra.mxu0 %v200
    %222 = vmatpush.msra.mxu0 %v199
    %223 = vmatpush.msra.mxu0 %v198
    %224 = vmatpush.msra.mxu0 %v197
    %225 = vmatpush.msra.mxu0 %v196
    %226 = vmatpush.msra.mxu0 %v195
    %227 = vmatpush.msra.mxu0 %v194
    %228 = vmatpush.msra.mxu0 %v193
    %229 = vmatpush.msra.mxu0 %v192
    %230 = vmatpush.msra.mxu0 %v191
    %231 = vmatpush.msra.mxu0 %v190
    %232 = vmatpush.msra.mxu0 %v189
    %233 = vmatpush.msra.mxu0 %v188
    %234 = vmatpush.msra.mxu0 %v187
    %235 = vmatpush.msra.mxu0 %v186
    %236 = vmatpush.msra.mxu0 %v185
    %237 = vmatmul.f32.gmra.mxu0 %v175
    %v238 = vpop.f32.mrf.mxu0
    %v239 = vadd.f32 %v219, %v238
    %240 = vmatmul.f32.gmra.mxu0 %v177
    %v241 = vpop.f32.mrf.mxu0
    %v242 = vadd.f32 %v219, %v241
    %243 = vmatmul.f32.gmra.mxu0 %v179
    %v244 = vpop.f32.mrf.mxu0
    %v245 = vadd.f32 %v219, %v244
    %246 = vmatmul.f32.gmra.mxu0 %v181
    %v247 = vpop.f32.mrf.mxu0
    %v248 = vadd.f32 %v219, %v247
    %249 = vmatmul.f32.gmra.mxu0 %v183
    %v250 = vpop.f32.mrf.mxu0
    %v251 = vadd.f32 %v219, %v250
    %252 = vdwg.mxu0
    %253 = vmatpush.msra.mxu0 %v216
    %254 = vmatpush.msra.mxu0 %v215
    %255 = vmatpush.msra.mxu0 %v214
    %256 = vmatpush.msra.mxu0 %v213
    %257 = vmatpush.msra.mxu0 %v212
    %258 = vmatpush.msra.mxu0 %v211
    %259 = vmatpush.msra.mxu0 %v210
    %260 = vmatpush.msra.mxu0 %v209
    %261 = vmatpush.msra.mxu0 %v208
    %262 = vmatpush.msra.mxu0 %v207
    %263 = vmatpush.msra.mxu0 %v206
    %264 = vmatpush.msra.mxu0 %v205
    %265 = vmatpush.msra.mxu0 %v204
    %266 = vmatpush.msra.mxu0 %v203
    %267 = vmatpush.msra.mxu0 %v202
    %268 = vmatpush.msra.mxu0 %v201
    %269 = vmatmul.f32.gmra.mxu0 %v176
    %v270 = vpop.f32.mrf.mxu0
    %v271 = vadd.f32 %v239, %v270
    %272 = vmatmul.f32.gmra.mxu0 %v178
    %v273 = vpop.f32.mrf.mxu0
    %v274 = vadd.f32 %v242, %v273
    %275 = vmatmul.f32.gmra.mxu0 %v180
    %v276 = vpop.f32.mrf.mxu0
    %v277 = vadd.f32 %v245, %v276
    %278 = vmatmul.f32.gmra.mxu0 %v182
    %v279 = vpop.f32.mrf.mxu0
    %v280 = vadd.f32 %v248, %v279
    %281 = vmatmul.f32.gmra.mxu0 %v184
    %v282 = vpop.f32.mrf.mxu0
    %v283 = vadd.f32 %v251, %v282
    %284 = vdwg.mxu0
    %v285 = vmax.f32 %v271, 0.0
    %v286 = vmax.f32 %v274, 0.0
    %v287 = vmax.f32 %v277, 0.0
    %v288 = vmax.f32 %v280, 0.0
    %v289 = vmax.f32 %v283, 0.0
    %v290 = vld [vmem:[#allocation5] sm:$0xff]
    %v291 = vld [vmem:[#allocation5 + $0x8] sm:$0xff]
    %v292 = vld [vmem:[#allocation5 + $0x10] sm:$0xff]
    %v293 = vld [vmem:[#allocation5 + $0x18] sm:$0xff]
    %v294 = vld [vmem:[#allocation5 + $0x20] sm:$0xff]
    %v295 = vld [vmem:[#allocation5 + $0x28] sm:$0xff]
    %v296 = vld [vmem:[#allocation5 + $0x30] sm:$0xff]
    %v297 = vld [vmem:[#allocation5 + $0x38] sm:$0xff]
    %v298 = vld [vmem:[#allocation5 + $0x40] sm:$0xff]
    %v299 = vld [vmem:[#allocation5 + $0x48] sm:$0xff]
    %v300 = vld [vmem:[#allocation5 + $0x50] sm:$0xff]
    %v301 = vld [vmem:[#allocation5 + $0x58] sm:$0xff]
    %v302 = vld [vmem:[#allocation5 + $0x60] sm:$0xff]
    %v303 = vld [vmem:[#allocation5 + $0x68] sm:$0xff]
    %v304 = vld [vmem:[#allocation5 + $0x70] sm:$0xff]
    %v305 = vld [vmem:[#allocation5 + $0x78] sm:$0xff]
    %v306 = vld [vmem:[%s6] sm:$0x1]
    %v308 = vperm.slane %v306, 0
    %310 = vmatpush.msra.mxu0 %v305
    %311 = vmatpush.msra.mxu0 %v304
    %312 = vmatpush.msra.mxu0 %v303
    %313 = vmatpush.msra.mxu0 %v302
    %314 = vmatpush.msra.mxu0 %v301
    %315 = vmatpush.msra.mxu0 %v300
    %316 = vmatpush.msra.mxu0 %v299
    %317 = vmatpush.msra.mxu0 %v298
    %318 = vmatpush.msra.mxu0 %v297
    %319 = vmatpush.msra.mxu0 %v296
    %320 = vmatpush.msra.mxu0 %v295
    %321 = vmatpush.msra.mxu0 %v294
    %322 = vmatpush.msra.mxu0 %v293
    %323 = vmatpush.msra.mxu0 %v292
    %324 = vmatpush.msra.mxu0 %v291
    %325 = vmatpush.msra.mxu0 %v290
    %326 = vmatmul.f32.gmra.mxu0 %v285
    %v327 = vpop.f32.mrf.mxu0
    %v328 = vadd.f32 %v308, %v327
    %329 = vmatmul.f32.gmra.mxu0 %v286
    %v330 = vpop.f32.mrf.mxu0
    %v331 = vadd.f32 %v308, %v330
    %332 = vmatmul.f32.gmra.mxu0 %v287
    %v333 = vpop.f32.mrf.mxu0
    %v334 = vadd.f32 %v308, %v333
    %335 = vmatmul.f32.gmra.mxu0 %v288
    %v336 = vpop.f32.mrf.mxu0
    %v337 = vadd.f32 %v308, %v336
    %338 = vmatmul.f32.gmra.mxu0 %v289
    %v339 = vpop.f32.mrf.mxu0
    %v340 = vadd.f32 %v308, %v339
    %341 = vdwg.mxu0
    %v342 = vmax.f32 %v328, 0.0
    %v343 = vmax.f32 %v331, 0.0
    %v344 = vmax.f32 %v334, 0.0
    %v345 = vmax.f32 %v337, 0.0
    %v346 = vmax.f32 %v340, 0.0
    %v347 = vld [vmem:[#allocation7] sm:$0xff]
    %v348 = vld [vmem:[#allocation7 + $0x8] sm:$0xff]
    %v349 = vld [vmem:[#allocation7 + $0x10] sm:$0xff]
    %v350 = vld [vmem:[#allocation7 + $0x18] sm:$0xff]
    %v351 = vld [vmem:[#allocation7 + $0x20] sm:$0xff]
    %v352 = vld [vmem:[#allocation7 + $0x28] sm:$0xff]
    %v353 = vld [vmem:[#allocation7 + $0x30] sm:$0xff]
    %v354 = vld [vmem:[#allocation7 + $0x38] sm:$0xff]
    %v355 = vld [vmem:[#allocation7 + $0x40] sm:$0xff]
    %v356 = vld [vmem:[#allocation7 + $0x48] sm:$0xff]
    %v357 = vld [vmem:[#allocation7 + $0x50] sm:$0xff]
    %v358 = vld [vmem:[#allocation7 + $0x58] sm:$0xff]
    %v359 = vld [vmem:[#allocation7 + $0x60] sm:$0xff]
    %v360 = vld [vmem:[#allocation7 + $0x68] sm:$0xff]
    %v361 = vld [vmem:[#allocation7 + $0x70] sm:$0xff]
    %v362 = vld [vmem:[#allocation7 + $0x78] sm:$0xff]
    %v363 = vld [vmem:[%s8] sm:$0x1]
    %v365 = vperm.slane %v363, 0
    %367 = vmatpush.msra.mxu0 %v362
    %368 = vmatpush.msra.mxu0 %v361
    %369 = vmatpush.msra.mxu0 %v360
    %370 = vmatpush.msra.mxu0 %v359
    %371 = vmatpush.msra.mxu0 %v358
    %372 = vmatpush.msra.mxu0 %v357
    %373 = vmatpush.msra.mxu0 %v356
    %374 = vmatpush.msra.mxu0 %v355
    %375 = vmatpush.msra.mxu0 %v354
    %376 = vmatpush.msra.mxu0 %v353
    %377 = vmatpush.msra.mxu0 %v352
    %378 = vmatpush.msra.mxu0 %v351
    %379 = vmatpush.msra.mxu0 %v350
    %380 = vmatpush.msra.mxu0 %v349
    %381 = vmatpush.msra.mxu0 %v348
    %382 = vmatpush.msra.mxu0 %v347
    %383 = vmatmul.f32.gmra.mxu0 %v342
    %v384 = vpop.f32.mrf.mxu0
    %v385 = vadd.f32 %v365, %v384
    %386 = vmatmul.f32.gmra.mxu0 %v343
    %v387 = vpop.f32.mrf.mxu0
    %v388 = vadd.f32 %v365, %v387
    %389 = vmatmul.f32.gmra.mxu0 %v344
    %v390 = vpop.f32.mrf.mxu0
    %v391 = vadd.f32 %v365, %v390
    %392 = vmatmul.f32.gmra.mxu0 %v345
    %v393 = vpop.f32.mrf.mxu0
    %v394 = vadd.f32 %v365, %v393
    %395 = vmatmul.f32.gmra.mxu0 %v346
    %v396 = vpop.f32.mrf.mxu0
    %v397 = vadd.f32 %v365, %v396
    %398 = vdwg.mxu0
    %v399 = vtanh.pop %v385
    %v400 = vtanh.pop %v388
    %v401 = vtanh.pop %v391
    %v402 = vtanh.pop %v394
    %v403 = vtanh.pop %v397
    %v404 = vmul.f32 %v399, 2.0
    %v405 = vmul.f32 %v400, 2.0
    %v406 = vmul.f32 %v401, 2.0
    %v407 = vmul.f32 %v402, 2.0
    %v408 = vmul.f32 %v403, 2.0
    %409 = vst [vmem:[#allocation8] sm:$0xff] %v404
    %410 = vst [vmem:[#allocation8 + $0x8] sm:$0xff] %v405
    %411 = vst [vmem:[#allocation8 + $0x10] sm:$0xff] %v406
    %412 = vst [vmem:[#allocation8 + $0x18] sm:$0xff] %v407
    %413 = vst [vmem:[#allocation8 + $0x20] sm:$0xff] %v408
    // Predicated region
    $region50: #{tpu_custom_call.1} parent=1 // pred_check
      _
    $region51: #{tpu_custom_call.1} parent=1 // pred_check_branch
      %415 = sbr.rel (0) target = $region53
    $region52: #{tpu_custom_call.1} parent=1 // pred_region
      %417 = vsyncadd [#allocation4], 0
      %s418 = sshll.u32 [#allocation8], 4
      %s419 = int_to_ptr.vmem [resolvable:$true] %s418
      %s420 = sshll.u32 %s9, 4
      %s421 = int_to_ptr.hbm [resolvable:$true] %s420
      %426 = dma.vmem_to_hbm [thread:$0]  %s419, 640, %s421, [#allocation4], 128, 128, 8
    $region53: #{tpu_custom_call.1} parent=1 // pred_fallthru
      _
    // Predicated region
    $region54: #{tpu_custom_call.1} parent=1 // pred_check
      _
    $region55: #{tpu_custom_call.1} parent=1 // pred_check_branch
      %428 = sbr.rel (0) target = $region57
    $region56: #{tpu_custom_call.1} parent=1 // pred_region
      %430 = dma.done [#allocation4], 640
    $region57: #{tpu_custom_call.1} parent=1 // pred_fallthru
      _
    %431 = vsyncpa [#allocation3], 1
    %432 = vsyncpa [#allocation6], 1
    %433 = vsyncpa [#allocation4], 1

</llo_original>
